<compile_context>
chip_gen: v7x
topology: tpu7x:2x2x1
jax: 0.10.0
libtpu: 0.0.40
codegen_flags: <defaults>
</compile_context>

<pallas_src>
import jax
import jax.numpy as jnp
from jax.experimental import pallas as pl
from jax.experimental.pallas import tpu as pltpu


def _sigmoid_kernel(x_ref, o_ref):
    x = x_ref[...]
    # Compute in f32 in-register (exp -> EUP, rest -> VPU); store native dtype.
    y = jax.nn.sigmoid(x.astype(jnp.float32))
    o_ref[...] = y.astype(o_ref.dtype)


# Per-block VMEM budget. Double-buffered (input + output) => 4 * 2 MiB = 8 MiB,
# within every generation's default scoped-VMEM limit (v5e 16 MiB is the floor).
_VMEM_BLOCK_BYTES = 2 * 1024 * 1024


def likelihood_forward(function_samples):
    """Elementwise sigmoid of `function_samples` via a Pallas TPU kernel."""
    orig_shape = function_samples.shape
    dtype = function_samples.dtype

    # Flatten to 2D (rows, lanes); last axis -> TPU lane axis.  Row-major
    # reshape is metadata-only (no extra HBM pass).
    if function_samples.ndim == 0:
        x2d = function_samples.reshape(1, 1)
    elif function_samples.ndim == 1:
        x2d = function_samples.reshape(1, -1)
    else:
        x2d = function_samples.reshape(-1, orig_shape[-1])
    R, C = x2d.shape

    itemsize = jnp.dtype(dtype).itemsize

    # Lane (fast-axis) block: lane-dense (multiple of 128) whenever possible,
    # otherwise a full-width block (block dim == array dim is always legal).
    if C % 128 == 0:
        bc = min(C, 1024)
    elif C <= 1024:
        bc = C
    else:
        bc = 1024  # ragged lane tail on the last column block is masked

    # Row (sublane) block: as many rows as fit the per-block VMEM budget.
    max_rows = max(1, _VMEM_BLOCK_BYTES // (bc * itemsize))
    if max_rows >= R:
        br = R  # single full-height block (legal regardless of alignment)
    else:
        br = max(8, (max_rows // 8) * 8)  # multiple of 8; ragged tail masked

    grid = (pl.cdiv(R, br), pl.cdiv(C, bc))

    out2d = pl.pallas_call(
        _sigmoid_kernel,
        out_shape=jax.ShapeDtypeStruct((R, C), dtype),
        grid_spec=pltpu.PrefetchScalarGridSpec(
            num_scalar_prefetch=0,
            grid=grid,
            in_specs=[pl.BlockSpec((br, bc), lambda i, j: (i, j))],
            out_specs=pl.BlockSpec((br, bc), lambda i, j: (i, j)),
        ),
        compiler_params=pltpu.CompilerParams(
            dimension_semantics=("parallel", "parallel"),
        ),
    )(x2d)

    return out2d.reshape(orig_shape)


def _reference(x):
    return jax.nn.sigmoid(x.astype(jnp.float32)).astype(x.dtype)


if __name__ == "__main__":
    key = jax.random.PRNGKey(0)

    # Primary input: function_samples = (num_mc_samples=8, batch=32) draws.
    function_samples = jax.random.normal(key, (8, 32), dtype=jnp.float32)
    result = likelihood_forward(function_samples)
    jax.block_until_ready(result)
    assert result.shape == function_samples.shape
    assert result.dtype == function_samples.dtype
    assert jnp.max(jnp.abs(result - _reference(function_samples))) < 1e-6

    # Extra correctness checks exercising other tiling paths.
    k1, k2, k3 = jax.random.split(key, 3)

    # Unaligned full-width block path (C not a multiple of 128).
    x_unaligned = jax.random.normal(k1, (24, 200), dtype=jnp.float32)
    r_unaligned = likelihood_forward(x_unaligned)
    assert jnp.max(jnp.abs(r_unaligned - _reference(x_unaligned))) < 1e-6

    # Multi-block grid with ragged boundary blocks on both axes.
    x_big = jax.random.normal(k2, (520, 1280), dtype=jnp.float32)
    r_big = likelihood_forward(x_big)
    assert jnp.max(jnp.abs(r_big - _reference(x_big))) < 1e-6

    # Native bf16 storage path (no wrapper-side upcast).
    x_bf16 = jax.random.normal(k3, (8, 32), dtype=jnp.bfloat16)
    r_bf16 = likelihood_forward(x_bf16)
    assert r_bf16.dtype == jnp.bfloat16
    assert jnp.max(
        jnp.abs(r_bf16.astype(jnp.float32) - _reference(x_bf16).astype(jnp.float32))
    ) < 1e-2

    jax.block_until_ready((r_unaligned, r_big, r_bf16))
    print("KERNEL_OK")
</pallas_src>

<mosaic_0001>
module attributes {stable_mosaic.version = 11 : i64} {
  func.func @_sigmoid_kernel(%arg0: i32, %arg1: i32, %arg2: memref<8x32xf32, #tpu.memory_space<vmem>>, %arg3: memref<8x32xf32, #tpu.memory_space<vmem>>) attributes {dimension_semantics = [#tpu.dimension_semantics<parallel>, #tpu.dimension_semantics<parallel>], iteration_bounds = array<i64: 1, 1>, scalar_prefetch = 0 : i64, scratch_operands = 0 : i64, tpu.core_type = #tpu.core_type<tc>, window_params = [{transform_indices = @transform_0, window_bounds = array<i64: 8, 32>}, {transform_indices = @transform_1, window_bounds = array<i64: 8, 32>}]} {
    %c0 = arith.constant 0 : index
    %c0_0 = arith.constant 0 : index
    %0 = vector.load %arg2[%c0, %c0_0] : memref<8x32xf32, #tpu.memory_space<vmem>>, vector<8x32xf32>
    %1 = arith.negf %0 : vector<8x32xf32>
    %2 = math.exp %1 : vector<8x32xf32>
    %cst = arith.constant 1.000000e+00 : f32
    %3 = vector.broadcast %cst : f32 to vector<8x32xf32>
    %4 = arith.addf %3, %2 : vector<8x32xf32>
    %5 = arith.divf %3, %4 : vector<8x32xf32>
    %c0_1 = arith.constant 0 : index
    %c0_2 = arith.constant 0 : index
    %6 = vector.load %arg3[%c0_1, %c0_2] : memref<8x32xf32, #tpu.memory_space<vmem>>, vector<8x32xf32>
    tpu.vector_store %arg3[%c0_1, %c0_2], %5 {strides = array<i32>} : memref<8x32xf32, #tpu.memory_space<vmem>>, vector<8x32xf32>,
    return
  }
  func.func @transform_0(%arg0: i32, %arg1: i32) -> (i32, i32) {
    %c0_i32 = arith.constant 0 : i32
    return %arg0, %arg1 : i32, i32
  }
  func.func @transform_1(%arg0: i32, %arg1: i32) -> (i32, i32) {
    %c0_i32 = arith.constant 0 : i32
    return %arg0, %arg1 : i32, i32
  }
}

</mosaic_0001>

<llo_original>
// kernel: tpu_custom_call.1
$region0: #{tpu_custom_call.1}
  #allocation0 [shape = 'u32[]', space=smem, size = 0x4, offset = 0x4, fixed_abs, tag = 'smem constant byte address 0x4 - core index']
  #allocation1 [shape = 'u32[144,128]{1,0:T(1,128)}', space=vmem, size = 0x12000, scoped, tag = 'internal scratch']
  %s0 = inlined_call_operand.hbm [shape: f32[8,32], index: 0, kind: input, shape index: {}]
  %s1 = inlined_call_operand.hbm [shape: f32[8,32], index: 1, kind: output, shape index: {}]
  %s2 = sld [smem:[#allocation0]]
  $region18: #{tpu_custom_call.1} parent=0
    _
  %s4 = ssub.s32 1, %s2
  %s5 = scalar_select 0, %s4, %s2
  $region1: #{tpu_custom_call.1} parent=0
    #allocation2 [shape = 'u8[4096]{0}', space=vmem, size = 0x1000, scoped, tag = 'input window, operand 0, single buffered']
    #allocation3 [shape = 's32[1]{0}', space=sflag, size = 0x4, scoped, tag = 'scoped memory for tpu_custom_call.1']
    #allocation4 [shape = 's32[1]{0}', space=sflag, size = 0x4, scoped, tag = 'scoped memory for tpu_custom_call.1']
    #allocation5 [shape = 'u8[4096]{0}', space=vmem, size = 0x1000, scoped, tag = 'output window, operand 0, single buffered']
    %6 = vsyncpa [#allocation3], 0
    %7 = vsyncpa [#allocation4], 0
    // Predicated region
    $region2: #{tpu_custom_call.1} parent=1 // pred_check
      _
    $region3: #{tpu_custom_call.1} parent=1 // pred_check_branch
      %9 = sbr.rel (0) target = $region5
    $region4: #{tpu_custom_call.1} parent=1 // pred_region
      %s11 = ssub.s32 128, 128
      %12 = vsyncadd [#allocation3], %s11
      %s14 = sshll.u32 [#allocation2], 4
      %s15 = int_to_ptr.vmem [resolvable:$true] %s14
      %17 = dma.hbm_to_vmem [thread:$0]  %s0, 128, %s15, [#allocation3]
    $region5: #{tpu_custom_call.1} parent=1 // pred_fallthru
      _
    // Predicated region
    $region6: #{tpu_custom_call.1} parent=1 // pred_check
      _
    $region7: #{tpu_custom_call.1} parent=1 // pred_check_branch
      %19 = sbr.rel (0) target = $region9
    $region8: #{tpu_custom_call.1} parent=1 // pred_region
      %20 = dma.done [#allocation3], 128
    $region9: #{tpu_custom_call.1} parent=1 // pred_fallthru
      _
    %v21 = vld [vmem:[#allocation2] sm:$0xff]
    %v22 = vxor.u32 %v21, 2147483648
    %v23 = vmul.f32 %v22, 1.442695
    %v24 = vpow.pop %v23
    %v25 = vadd.f32 %v24, 1.0
    %v26 = vrcp.pop %v25
    %v27 = vmul.f32 1.0, %v26
    %vm28 = vcmask 261120
    %29 = vst.msk [vmem:[#allocation5] sm:$0xff] %vm28, %v27
    // Predicated region
    $region10: #{tpu_custom_call.1} parent=1 // pred_check
      _
    $region11: #{tpu_custom_call.1} parent=1 // pred_check_branch
      %31 = sbr.rel (0) target = $region13
    $region12: #{tpu_custom_call.1} parent=1 // pred_region
      %s33 = ssub.s32 128, 128
      %34 = vsyncadd [#allocation4], %s33
      %s36 = sshll.u32 [#allocation5], 4
      %s37 = int_to_ptr.vmem [resolvable:$true] %s36
      %39 = dma.vmem_to_hbm [thread:$0]  %s37, 128, %s1, [#allocation4]
    $region13: #{tpu_custom_call.1} parent=1 // pred_fallthru
      _
    // Predicated region
    $region14: #{tpu_custom_call.1} parent=1 // pred_check
      _
    $region15: #{tpu_custom_call.1} parent=1 // pred_check_branch
      %41 = sbr.rel (0) target = $region17
    $region16: #{tpu_custom_call.1} parent=1 // pred_region
      %42 = dma.done [#allocation4], 128
    $region17: #{tpu_custom_call.1} parent=1 // pred_fallthru
      _
    %43 = vsyncpa [#allocation3], 1
    %44 = vsyncpa [#allocation4], 1

</llo_original>
